<compile_context>
chip_gen: v6e
topology: v6e:2x2x1
jax: 0.10.0
libtpu: 0.0.40
codegen_flags: <defaults>
</compile_context>

<pallas_src>
import jax
import jax.numpy as jnp
from jax import lax
from jax.experimental import pallas as pl
from jax.experimental.pallas import tpu as pltpu

C_IN = 64
C_OUT = 32
HIDDEN = 32
KERNEL = 3
STRIDE = 3
BN_EPS = 1e-5
PADDING = (2 * 136 + KERNEL - 3) // 2 + 1  # 137, as in the PyTorch __init__
CIN_K = C_IN * KERNEL                      # 192
G4 = 4 * HIDDEN                            # 128 (lane-dense gate width)


def _round_up(x, m):
    return ((x + m - 1) // m) * m


# ----------------------------- Pallas kernels ------------------------------

def conv_stats_kernel(p_ref, w_ref, y_ref, sum_ref, sq_ref):
    """Pass 1 over the active patches.

    p_ref:   (ROWS_BLK, CIN_K) time-major im2col patches tile
    w_ref:   (CIN_K, C_OUT)    conv weight (reshaped, transposed)
    y_ref:   (ROWS_BLK, C_OUT) bias-free conv output (consumed by pass 2)
    sum_ref, sq_ref: (1, C_OUT) resident accumulators for BN batch stats
    """
    @pl.when(pl.program_id(0) == 0)
    def _():
        sum_ref[...] = jnp.zeros_like(sum_ref)
        sq_ref[...] = jnp.zeros_like(sq_ref)

    y = jnp.dot(p_ref[...], w_ref[...], preferred_element_type=jnp.float32)
    y_ref[...] = y
    sum_ref[...] += jnp.sum(y, axis=0, keepdims=True)
    sq_ref[...] += jnp.sum(y * y, axis=0, keepdims=True)


def conv_gates_kernel(y_ref, w_ref, b_ref, o_ref):
    """Pass 2: fused BatchNorm + LSTM input projection (W_ih) + biases.

    y_ref: (ROWS_BLK, C_OUT)  conv output from pass 1
    w_ref: (C_OUT, 4H)        scale * W_ih^T  (BN scale folded in)
    b_ref: (1, 4H)            shift @ W_ih^T + b_ih + b_hh
    o_ref: (ROWS_BLK, 4H)     lane-dense (128) gate pre-activations
    """
    o_ref[...] = (jnp.dot(y_ref[...], w_ref[...],
                          preferred_element_type=jnp.float32) + b_ref[...])


def lstm_kernel(g_ref, whh_ref, o_ref, h_scr, c_scr):
    """Recurrence only: the input projection was hoisted into pass 2.

    g_ref:   (T_BLK, B_BLK, 4H)  precomputed x@W_ih^T + bias (gate order ifgo)
    whh_ref: (H, 4H)             W_hh^T
    o_ref:   (T_BLK, B_BLK, H)   hidden states
    h_scr, c_scr: (B_BLK, H)     recurrent state persisted across time chunks
    """
    @pl.when(pl.program_id(1) == 0)
    def _():
        h_scr[...] = jnp.zeros_like(h_scr)
        c_scr[...] = jnp.zeros_like(c_scr)

    T = g_ref.shape[0]
    H = HIDDEN
    whh = whh_ref[...]                               # hoisted load

    def step(t, carry):
        h, c = carry                                 # vreg-resident carry
        z = g_ref[t] + jnp.dot(h, whh, preferred_element_type=jnp.float32)
        sig = jax.nn.sigmoid(z)                      # one 128-lane EUP pass
        th = jnp.tanh(z)                             # one 128-lane EUP pass
        i = sig[:, 0:H]
        f = sig[:, H:2 * H]
        g = th[:, 2 * H:3 * H]
        o = sig[:, 3 * H:4 * H]
        c = f * c + i * g
        h = o * jnp.tanh(c)
        o_ref[t] = h                                 # single store per step
        return (h, c)

    h_f, c_f = lax.fori_loop(0, T, step, (h_scr[...], c_scr[...]), unroll=4)
    h_scr[...] = h_f                                 # persist once per chunk
    c_scr[...] = c_f


# ------------------------------ JAX wrapper --------------------------------

def init_params(key):
    ks = jax.random.split(key, 6)
    k_conv = 1.0 / (C_IN * KERNEL) ** 0.5
    k_lstm = 1.0 / HIDDEN ** 0.5
    return {
        "conv_w": jax.random.uniform(ks[0], (C_OUT, C_IN, KERNEL), jnp.float32,
                                     -k_conv, k_conv),
        "conv_b": jax.random.uniform(ks[1], (C_OUT,), jnp.float32, -k_conv, k_conv),
        "bn_gamma": jnp.ones((C_OUT,), jnp.float32),
        "bn_beta": jnp.zeros((C_OUT,), jnp.float32),
        "w_ih": jax.random.uniform(ks[2], (4 * HIDDEN, HIDDEN), jnp.float32,
                                   -k_lstm, k_lstm),
        "w_hh": jax.random.uniform(ks[3], (4 * HIDDEN, HIDDEN), jnp.float32,
                                   -k_lstm, k_lstm),
        "b_ih": jax.random.uniform(ks[4], (4 * HIDDEN,), jnp.float32, -k_lstm, k_lstm),
        "b_hh": jax.random.uniform(ks[5], (4 * HIDDEN,), jnp.float32, -k_lstm, k_lstm),
    }


def cnn_lstm_block(x, params, *, lstm_t_blk=128, lstm_batch_splits=1,
                   conv_rows_blk_max=1024):
    """x: (B, 64, L) float32  ->  (B, 32, L_out) float32.

    lstm_batch_splits: keep 1 on v5e/v6e (single TensorCore); 2 on v7x shards
    the recurrence across both TensorCores via the "parallel" batch axis.
    """
    B, Cin, L = x.shape
    assert Cin == C_IN
    L_out = (L + 2 * PADDING - KERNEL) // STRIDE + 1

    # --- active window: output steps whose receptive field [3t, 3t+3) overlaps
    # the real signal [PADDING, PADDING+L).  All other steps see pure zero
    # padding (conv output exactly 0 -> gates == b_big), so skip their conv.
    t_lo = max(0, -(-(PADDING - KERNEL + 1) // STRIDE))
    t_hi = min(L_out, (PADDING + L - 1) // STRIDE + 1)
    T_act = t_hi - t_lo
    rows_act = T_act * B

    # --- im2col: stride == kernel, so patches are pad + reshape + ONE transpose
    lpad = PADDING - t_lo * STRIDE
    rpad = t_hi * STRIDE - PADDING - L
    x_win = jnp.pad(x, ((0, 0), (0, 0), (lpad, rpad)))       # (B, Cin, T_act*K)
    x_r = x_win.reshape(B, C_IN, T_act, KERNEL)
    patches = jnp.transpose(x_r, (2, 0, 1, 3)).reshape(rows_act, CIN_K)

    # Conv row tiling is independent of the LSTM time chunking.
    rows_blk = min(conv_rows_blk_max, _round_up(rows_act, 8))
    rows_pad = _round_up(rows_act, rows_blk)
    if rows_pad != rows_act:                  # extra zero rows contribute nothing
        patches = jnp.pad(patches, ((0, rows_pad - rows_act), (0, 0)))
    n_conv = rows_pad // rows_blk

    w_mat = params["conv_w"].reshape(C_OUT, CIN_K).T          # (192, 32)

    # --- pass 1: conv output + BN batch statistics (reduction over row tiles)
    y_act, sum_y, sq_y = pl.pallas_call(
        conv_stats_kernel,
        out_shape=(jax.ShapeDtypeStruct((rows_pad, C_OUT), jnp.float32),
                   jax.ShapeDtypeStruct((1, C_OUT), jnp.float32),
                   jax.ShapeDtypeStruct((1, C_OUT), jnp.float32)),
        grid=(n_conv,),
        in_specs=[pl.BlockSpec((rows_blk, CIN_K), lambda i: (i, 0)),
                  pl.BlockSpec((CIN_K, C_OUT), lambda i: (0, 0))],
        out_specs=(pl.BlockSpec((rows_blk, C_OUT), lambda i: (i, 0)),
                   pl.BlockSpec((1, C_OUT), lambda i: (0, 0)),
                   pl.BlockSpec((1, C_OUT), lambda i: (0, 0))),
        compiler_params=pltpu.CompilerParams(
            dimension_semantics=("arbitrary",)),
    )(patches, w_mat)

    # Inactive / padded rows are exactly zero; they stay in the count.
    count = float(B * L_out)
    mean = sum_y[0] / count                                   # (32,)
    var = jnp.maximum(sq_y[0] / count - mean * mean, 0.0)     # biased, as PyTorch
    scale = params["bn_gamma"] * lax.rsqrt(var + BN_EPS)
    shift = params["bn_beta"] - mean * scale
    # NOTE: conv bias omitted on purpose — training-mode BN cancels it exactly.

    w_ih_t = params["w_ih"].T                                 # (32, 128)
    w_small = scale[:, None] * w_ih_t                         # BN scale folded in
    b_big = (shift @ w_ih_t + params["b_ih"] + params["b_hh"])[None, :]  # (1,128)

    # --- pass 2: BN + LSTM input projection for the active rows only --------
    gates_act = pl.pallas_call(
        conv_gates_kernel,
        out_shape=jax.ShapeDtypeStruct((rows_pad, G4), jnp.float32),
        grid=(n_conv,),
        in_specs=[pl.BlockSpec((rows_blk, C_OUT), lambda i: (i, 0)),
                  pl.BlockSpec((C_OUT, G4), lambda i: (0, 0)),
                  pl.BlockSpec((1, G4), lambda i: (0, 0))],
        out_specs=pl.BlockSpec((rows_blk, G4), lambda i: (i, 0)),
        compiler_params=pltpu.CompilerParams(
            dimension_semantics=("parallel",)),
    )(y_act, w_small, b_big)

    # --- assemble full gate sequence: inactive time steps are the constant ---
    t_blk = min(lstm_t_blk, L_out)
    n_t = pl.cdiv(L_out, t_blk)
    T_pad = n_t * t_blk
    top = jnp.broadcast_to(b_big, (t_lo * B, G4))
    bot = jnp.broadcast_to(b_big, ((T_pad - t_hi) * B, G4))
    gates = jnp.concatenate([top, gates_act[:rows_act], bot], axis=0)
    gates = gates.reshape(T_pad, B, G4)        # free row-major reshape

    # --- LSTM: per-step work is only h @ W_hh + elementwise ------------------
    n_b = lstm_batch_splits
    assert B % n_b == 0, "lstm_batch_splits must divide the batch"
    b_blk = B // n_b
    if n_b > 1:
        assert b_blk % 8 == 0, "batch splits need 8-row aligned blocks"
    h_seq = pl.pallas_call(
        lstm_kernel,
        out_shape=jax.ShapeDtypeStruct((T_pad, B, HIDDEN), jnp.float32),
        grid=(n_b, n_t),
        in_specs=[pl.BlockSpec((t_blk, b_blk, G4), lambda b, i: (i, b, 0)),
                  pl.BlockSpec((HIDDEN, G4), lambda b, i: (0, 0))],
        out_specs=pl.BlockSpec((t_blk, b_blk, HIDDEN), lambda b, i: (i, b, 0)),
        scratch_shapes=[pltpu.VMEM((b_blk, HIDDEN), jnp.float32),
                        pltpu.VMEM((b_blk, HIDDEN), jnp.float32)],
        compiler_params=pltpu.CompilerParams(
            dimension_semantics=("parallel", "arbitrary")),
    )(gates, params["w_hh"].T)

    # TODO(synk): emit (B, H, T) tiles (lane-dense time axis) directly from the
    # LSTM kernel instead of this wrapper transpose.
    return jnp.transpose(h_seq[:L_out], (1, 2, 0))


# --------------------------- pure-JAX reference -----------------------------

def reference(x, params):
    y = lax.conv_general_dilated(
        x, params["conv_w"], window_strides=(STRIDE,),
        padding=[(PADDING, PADDING)],
        dimension_numbers=("NCH", "OIH", "NCH")) + params["conv_b"][None, :, None]
    mean = jnp.mean(y, axis=(0, 2), keepdims=True)
    var = jnp.mean((y - mean) ** 2, axis=(0, 2), keepdims=True)
    y = params["bn_gamma"][None, :, None] * (y - mean) * lax.rsqrt(var + BN_EPS) \
        + params["bn_beta"][None, :, None]
    seq = jnp.transpose(y, (0, 2, 1))                    # (B, T, 32)

    H = HIDDEN
    wih_t, whh_t = params["w_ih"].T, params["w_hh"].T
    bias = params["b_ih"] + params["b_hh"]

    def step(carry, x_t):
        h, c = carry
        gates = x_t @ wih_t + h @ whh_t + bias
        i = jax.nn.sigmoid(gates[:, 0:H])
        f = jax.nn.sigmoid(gates[:, H:2 * H])
        g = jnp.tanh(gates[:, 2 * H:3 * H])
        o = jax.nn.sigmoid(gates[:, 3 * H:4 * H])
        c = f * c + i * g
        h = o * jnp.tanh(c)
        return (h, c), h

    B = x.shape[0]
    init = (jnp.zeros((B, H), jnp.float32), jnp.zeros((B, H), jnp.float32))
    _, hs = lax.scan(step, init, jnp.transpose(seq, (1, 0, 2)))
    return jnp.transpose(hs, (1, 2, 0))                  # (B, 32, T)


# ----------------------------------- main -----------------------------------

if __name__ == "__main__":
    key = jax.random.PRNGKey(0)
    k_x, k_p = jax.random.split(key)
    B, L = 2, 16
    x = jax.random.normal(k_x, (B, C_IN, L), jnp.float32)
    params = init_params(k_p)

    out = jax.block_until_ready(cnn_lstm_block(x, params))
    ref = jax.block_until_ready(reference(x, params))

    L_out = (L + 2 * PADDING - KERNEL) // STRIDE + 1
    assert out.shape == (B, C_OUT, L_out), out.shape
    assert bool(jnp.all(jnp.isfinite(out)))
    assert bool(jnp.allclose(out, ref, rtol=1e-3, atol=1e-3)), \
        float(jnp.max(jnp.abs(out - ref)))
    print("KERNEL_OK")
</pallas_src>

<mosaic_0001>
module attributes {stable_mosaic.version = 11 : i64} {
  func.func @conv_stats_kernel(%arg0: i32, %arg1: memref<16x192xf32, #tpu.memory_space<vmem>>, %arg2: memref<192x32xf32, #tpu.memory_space<vmem>>, %arg3: memref<16x32xf32, #tpu.memory_space<vmem>>, %arg4: memref<1x32xf32, #tpu.memory_space<vmem>>, %arg5: memref<1x32xf32, #tpu.memory_space<vmem>>) attributes {dimension_semantics = [#tpu.dimension_semantics<arbitrary>], iteration_bounds = array<i64: 1>, scalar_prefetch = 0 : i64, scratch_operands = 0 : i64, tpu.core_type = #tpu.core_type<tc>, window_params = [{transform_indices = @transform_0, window_bounds = array<i64: 16, 192>}, {pipeline_mode = #tpu.pipeline_mode<synchronous>, transform_indices = @transform_1, window_bounds = array<i64: 192, 32>}, {transform_indices = @transform_2, window_bounds = array<i64: 16, 32>}, {pipeline_mode = #tpu.pipeline_mode<synchronous>, transform_indices = @transform_3, window_bounds = array<i64: 1, 32>}, {pipeline_mode = #tpu.pipeline_mode<synchronous>, transform_indices = @transform_4, window_bounds = array<i64: 1, 32>}]} {
    %c0_i32 = arith.constant 0 : i32
    %0 = arith.cmpi eq, %arg0, %c0_i32 : i32
    %1 = arith.extui %0 : i1 to i32
    %c0_i32_0 = arith.constant 0 : i32
    %2 = arith.cmpi ne, %1, %c0_i32_0 : i32
    scf.if %2 {
      %cst_16 = arith.constant 0.000000e+00 : f32
      %18 = vector.broadcast %cst_16 : f32 to vector<1x32xf32>
      %c0_17 = arith.constant 0 : index
      %c0_18 = arith.constant 0 : index
      %19 = vector.load %arg4[%c0_17, %c0_18] : memref<1x32xf32, #tpu.memory_space<vmem>>, vector<1x32xf32>
      tpu.vector_store %arg4[%c0_17, %c0_18], %18 {strides = array<i32>} : memref<1x32xf32, #tpu.memory_space<vmem>>, vector<1x32xf32>,
      %cst_19 = arith.constant 0.000000e+00 : f32
      %20 = vector.broadcast %cst_19 : f32 to vector<1x32xf32>
      %c0_20 = arith.constant 0 : index
      %c0_21 = arith.constant 0 : index
      %21 = vector.load %arg5[%c0_20, %c0_21] : memref<1x32xf32, #tpu.memory_space<vmem>>, vector<1x32xf32>
      tpu.vector_store %arg5[%c0_20, %c0_21], %20 {strides = array<i32>} : memref<1x32xf32, #tpu.memory_space<vmem>>, vector<1x32xf32>,
    } else {
    }
    %c0 = arith.constant 0 : index
    %c0_1 = arith.constant 0 : index
    %3 = vector.load %arg1[%c0, %c0_1] : memref<16x192xf32, #tpu.memory_space<vmem>>, vector<16x192xf32>
    %c0_2 = arith.constant 0 : index
    %c0_3 = arith.constant 0 : index
    %4 = vector.load %arg2[%c0_2, %c0_3] : memref<192x32xf32, #tpu.memory_space<vmem>>, vector<192x32xf32>
    %cst = arith.constant dense<0.000000e+00> : vector<16x32xf32>
    %5 = tpu.matmul %3, %4, %cst {dimension_numbers = #tpu.dot_dimension_numbers<[1], [0], [0], [1], [0, 0, 1, 1], [], []>} : vector<16x192xf32>, vector<192x32xf32>, vector<16x32xf32> -> vector<16x32xf32>
    %c0_4 = arith.constant 0 : index
    %c0_5 = arith.constant 0 : index
    %6 = vector.load %arg3[%c0_4, %c0_5] : memref<16x32xf32, #tpu.memory_space<vmem>>, vector<16x32xf32>
    tpu.vector_store %arg3[%c0_4, %c0_5], %5 {strides = array<i32>} : memref<16x32xf32, #tpu.memory_space<vmem>>, vector<16x32xf32>,
    %c0_6 = arith.constant 0 : index
    %c0_7 = arith.constant 0 : index
    %7 = vector.load %arg4[%c0_6, %c0_7] : memref<1x32xf32, #tpu.memory_space<vmem>>, vector<1x32xf32>
    %cst_8 = arith.constant dense<0.000000e+00> : vector<32xf32>
    %8 = vector.multi_reduction <add>, %5, %cst_8 [0] : vector<16x32xf32> to vector<32xf32>
    %9 = vector.shape_cast %8 : vector<32xf32> to vector<1x32xf32>
    %10 = arith.addf %7, %9 : vector<1x32xf32>
    %c0_9 = arith.constant 0 : index
    %c0_10 = arith.constant 0 : index
    %11 = vector.load %arg4[%c0_9, %c0_10] : memref<1x32xf32, #tpu.memory_space<vmem>>, vector<1x32xf32>
    tpu.vector_store %arg4[%c0_9, %c0_10], %10 {strides = array<i32>} : memref<1x32xf32, #tpu.memory_space<vmem>>, vector<1x32xf32>,
    %c0_11 = arith.constant 0 : index
    %c0_12 = arith.constant 0 : index
    %12 = vector.load %arg5[%c0_11, %c0_12] : memref<1x32xf32, #tpu.memory_space<vmem>>, vector<1x32xf32>
    %13 = arith.mulf %5, %5 : vector<16x32xf32>
    %cst_13 = arith.constant dense<0.000000e+00> : vector<32xf32>
    %14 = vector.multi_reduction <add>, %13, %cst_13 [0] : vector<16x32xf32> to vector<32xf32>
    %15 = vector.shape_cast %14 : vector<32xf32> to vector<1x32xf32>
    %16 = arith.addf %12, %15 : vector<1x32xf32>
    %c0_14 = arith.constant 0 : index
    %c0_15 = arith.constant 0 : index
    %17 = vector.load %arg5[%c0_14, %c0_15] : memref<1x32xf32, #tpu.memory_space<vmem>>, vector<1x32xf32>
    tpu.vector_store %arg5[%c0_14, %c0_15], %16 {strides = array<i32>} : memref<1x32xf32, #tpu.memory_space<vmem>>, vector<1x32xf32>,
    return
  }
  func.func @transform_0(%arg0: i32) -> (i32, i32) {
    %c0_i32 = arith.constant 0 : i32
    %c0_i32_0 = arith.constant 0 : i32
    return %arg0, %c0_i32 : i32, i32
  }
  func.func @transform_1(%arg0: i32) -> (i32, i32) {
    %c0_i32 = arith.constant 0 : i32
    %c0_i32_0 = arith.constant 0 : i32
    %c0_i32_1 = arith.constant 0 : i32
    return %c0_i32, %c0_i32_0 : i32, i32
  }
  func.func @transform_2(%arg0: i32) -> (i32, i32) {
    %c0_i32 = arith.constant 0 : i32
    %c0_i32_0 = arith.constant 0 : i32
    return %arg0, %c0_i32 : i32, i32
  }
  func.func @transform_3(%arg0: i32) -> (i32, i32) {
    %c0_i32 = arith.constant 0 : i32
    %c0_i32_0 = arith.constant 0 : i32
    %c0_i32_1 = arith.constant 0 : i32
    return %c0_i32, %c0_i32_0 : i32, i32
  }
  func.func @transform_4(%arg0: i32) -> (i32, i32) {
    %c0_i32 = arith.constant 0 : i32
    %c0_i32_0 = arith.constant 0 : i32
    %c0_i32_1 = arith.constant 0 : i32
    return %c0_i32, %c0_i32_0 : i32, i32
  }
}

</mosaic_0001>

<llo_original>
// kernel: tpu_custom_call.1
$region0: #{tpu_custom_call.1}
  #allocation0 [shape = 'u32[]', space=smem, size = 0x4, offset = 0x4, fixed_abs, tag = 'smem constant byte address 0x4 - core index']
  #allocation1 [shape = 'u32[144,128]{1,0:T(1,128)}', space=vmem, size = 0x12000, scoped, tag = 'internal scratch']
  %s0 = inlined_call_operand.vmem [shape: f32[16,192], index: 0, kind: input, shape index: {}]
  %s1 = inlined_call_operand.vmem [shape: f32[192,32], index: 1, kind: input, shape index: {}]
  %s2 = inlined_call_operand.hbm [shape: f32[16,32], index: 2, kind: output, shape index: {0}]
  %s3 = inlined_call_operand.hbm [shape: f32[1,32], index: 3, kind: output, shape index: {1}]
  %s4 = inlined_call_operand.hbm [shape: f32[1,32], index: 4, kind: output, shape index: {2}]
  %5 = xla_tuple %s2, %s3, %s4
  %s6 = sld [smem:[#allocation0]]
  $region38: #{tpu_custom_call.1} parent=0
    _
  %s8 = ssub.s32 1, %s6
  %s9 = scalar_select 0, %s8, %s6
  $region1: #{tpu_custom_call.1} parent=0
    #allocation2 [shape = 'u8[8192]{0}', space=vmem, size = 0x2000, scoped, tag = 'output window, operand 0, single buffered']
    #allocation3 [shape = 's32[1]{0}', space=sflag, size = 0x4, scoped, tag = 'scoped memory for tpu_custom_call.1']
    #allocation4 [shape = 'u8[512]{0}', space=vmem, size = 0x400, scoped, tag = 'output window, operand 1, single buffered']
    #allocation5 [shape = 's32[1]{0}', space=sflag, size = 0x4, scoped, tag = 'scoped memory for tpu_custom_call.1']
    #allocation6 [shape = 'u8[512]{0}', space=vmem, size = 0x400, scoped, tag = 'output window, operand 2, single buffered']
    %10 = vsyncpa [#allocation3], 0
    %11 = vsyncpa [#allocation5], 0
    // Predicated region
    $region2: #{tpu_custom_call.1} parent=1 // pred_check
      _
    $region3: #{tpu_custom_call.1} parent=1 // pred_check_branch
      %13 = sbr.rel (0) target = $region5
    $region4: #{tpu_custom_call.1} parent=1 // pred_region
      _
    $region5: #{tpu_custom_call.1} parent=1 // pred_fallthru
      _
    // Predicated region
    $region6: #{tpu_custom_call.1} parent=1 // pred_check
      _
    $region7: #{tpu_custom_call.1} parent=1 // pred_check_branch
      %15 = sbr.rel (0) target = $region9
    $region8: #{tpu_custom_call.1} parent=1 // pred_region
      _
    $region9: #{tpu_custom_call.1} parent=1 // pred_fallthru
      _
    %p16 = scmp.eq.s32.totalorder 0, 0
    // Predicated region
    $region10: #{tpu_custom_call.1} parent=1 // pred_check
      %p17 = pneg %p16
    $region11: #{tpu_custom_call.1} parent=1 // pred_check_branch
      %19 = sbr.rel (%p17) target = $region13
    $region12: #{tpu_custom_call.1} parent=1 // pred_region
      %vm20 = vcmask 253952
      %21 = vst.msk [vmem:[#allocation4] sm:$0x1] %vm20, 0.0
      %22 = vst.msk [vmem:[#allocation6] sm:$0x1] %vm20, 0.0
    $region13: #{tpu_custom_call.1} parent=1 // pred_fallthru
      _
    %v23 = vld [vmem:[%s0] sm:$0xff]
    %v24 = vld [vmem:[%s0 + $0x8] sm:$0xff]
    %v25 = vld [vmem:[%s0 + $0x10] sm:$0xff]
    %v26 = vld [vmem:[%s0 + $0x18] sm:$0xff]
    %v27 = vld [vmem:[%s1] sm:$0xff]
    %v28 = vld [vmem:[%s1 + $0x8] sm:$0xff]
    %v29 = vld [vmem:[%s1 + $0x10] sm:$0xff]
    %v30 = vld [vmem:[%s1 + $0x18] sm:$0xff]
    %v31 = vld [vmem:[%s1 + $0x20] sm:$0xff]
    %v32 = vld [vmem:[%s1 + $0x28] sm:$0xff]
    %v33 = vld [vmem:[%s1 + $0x30] sm:$0xff]
    %v34 = vld [vmem:[%s1 + $0x38] sm:$0xff]
    %v35 = vld [vmem:[%s1 + $0x40] sm:$0xff]
    %v36 = vld [vmem:[%s1 + $0x48] sm:$0xff]
    %v37 = vld [vmem:[%s1 + $0x50] sm:$0xff]
    %v38 = vld [vmem:[%s1 + $0x58] sm:$0xff]
    %v39 = vld [vmem:[%s1 + $0x60] sm:$0xff]
    %v40 = vld [vmem:[%s1 + $0x68] sm:$0xff]
    %v41 = vld [vmem:[%s1 + $0x70] sm:$0xff]
    %v42 = vld [vmem:[%s1 + $0x78] sm:$0xff]
    %v43 = vld [vmem:[%s1 + $0x80] sm:$0xff]
    %v44 = vld [vmem:[%s1 + $0x88] sm:$0xff]
    %v45 = vld [vmem:[%s1 + $0x90] sm:$0xff]
    %v46 = vld [vmem:[%s1 + $0x98] sm:$0xff]
    %v47 = vld [vmem:[%s1 + $0xa0] sm:$0xff]
    %v48 = vld [vmem:[%s1 + $0xa8] sm:$0xff]
    %v49 = vld [vmem:[%s1 + $0xb0] sm:$0xff]
    %v50 = vld [vmem:[%s1 + $0xb8] sm:$0xff]
    %vm51 = vcmask 523264
    %v53 = vsel %vm51, %v24, 0
    %v56 = vsel %vm51, %v26, 0
    %58 = vmatprep.subr.mxu0 0.0
    %59 = vmatpush1.msra.mxu0 %v42
    %60 = vmatprep.subr.mxu0 0.0
    %61 = vmatpush1.msra.mxu0 %v41
    %62 = vmatprep.subr.mxu0 0.0
    %63 = vmatpush1.msra.mxu0 %v40
    %64 = vmatprep.subr.mxu0 0.0
    %65 = vmatpush1.msra.mxu0 %v39
    %66 = vmatprep.subr.mxu0 0.0
    %67 = vmatpush1.msra.mxu0 %v38
    %68 = vmatprep.subr.mxu0 0.0
    %69 = vmatpush1.msra.mxu0 %v37
    %70 = vmatprep.subr.mxu0 0.0
    %71 = vmatpush1.msra.mxu0 %v36
    %72 = vmatprep.subr.mxu0 0.0
    %73 = vmatpush1.msra.mxu0 %v35
    %74 = vmatprep.subr.mxu0 0.0
    %75 = vmatpush1.msra.mxu0 %v34
    %76 = vmatprep.subr.mxu0 0.0
    %77 = vmatpush1.msra.mxu0 %v33
    %78 = vmatprep.subr.mxu0 0.0
    %79 = vmatpush1.msra.mxu0 %v32
    %80 = vmatprep.subr.mxu0 0.0
    %81 = vmatpush1.msra.mxu0 %v31
    %82 = vmatprep.subr.mxu0 0.0
    %83 = vmatpush1.msra.mxu0 %v30
    %84 = vmatprep.subr.mxu0 0.0
    %85 = vmatpush1.msra.mxu0 %v29
    %86 = vmatprep.subr.mxu0 0.0
    %87 = vmatpush1.msra.mxu0 %v28
    %88 = vmatprep.subr.mxu0 0.0
    %89 = vmatpush1.msra.mxu0 %v27
    %90 = vmatprep.subr.mxu0 0.0
    %91 = vmatpush2.msra.mxu0 0.0
    %92 = vmatprep.subr.mxu0 0.0
    %93 = vmatpush2.msra.mxu0 0.0
    %94 = vmatprep.subr.mxu0 0.0
    %95 = vmatpush2.msra.mxu0 0.0
    %96 = vmatprep.subr.mxu0 0.0
    %97 = vmatpush2.msra.mxu0 0.0
    %98 = vmatprep.subr.mxu0 0.0
    %99 = vmatpush2.msra.mxu0 0.0
    %100 = vmatprep.subr.mxu0 0.0
    %101 = vmatpush2.msra.mxu0 0.0
    %102 = vmatprep.subr.mxu0 0.0
    %103 = vmatpush2.msra.mxu0 0.0
    %104 = vmatprep.subr.mxu0 0.0
    %105 = vmatpush2.msra.mxu0 0.0
    %106 = vmatprep.subr.mxu0 0.0
    %107 = vmatpush2.msra.mxu0 %v50
    %108 = vmatprep.subr.mxu0 0.0
    %109 = vmatpush2.msra.mxu0 %v49
    %110 = vmatprep.subr.mxu0 0.0
    %111 = vmatpush2.msra.mxu0 %v48
    %112 = vmatprep.subr.mxu0 0.0
    %113 = vmatpush2.msra.mxu0 %v47
    %114 = vmatprep.subr.mxu0 0.0
    %115 = vmatpush2.msra.mxu0 %v46
    %116 = vmatprep.subr.mxu0 0.0
    %117 = vmatpush2.msra.mxu0 %v45
    %118 = vmatprep.subr.mxu0 0.0
    %119 = vmatpush2.msra.mxu0 %v44
    %120 = vmatprep.subr.mxu0 0.0
    %121 = vmatpush2.msra.mxu0 %v43
    %122 = vmatprep.mubr.f32.mxu0 %v53
    %123 = vmatmul.mubr.f32.gmra.mxu0 %v23
    %v124 = vpop.f32.mrf.mxu0
    %v125 = vadd.f32 0.0, %v124
    %v126 = vpop.f32.mrf.mxu0
    %127 = vmatprep.mubr.f32.mxu0 %v56
    %128 = vmatmul.mubr.f32.gmra.mxu0 %v25
    %v129 = vpop.f32.mrf.mxu0
    %v130 = vadd.f32 0.0, %v129
    %v131 = vpop.f32.mrf.mxu0
    %132 = vdwg.mxu0
    %vm133 = vcmask 261120
    %134 = vst.msk [vmem:[#allocation2] sm:$0xff] %vm133, %v125
    %135 = vst.msk [vmem:[#allocation2 + $0x8] sm:$0xff] %vm133, %v130
    %v136 = vld [vmem:[#allocation4] sm:$0x1]
    %v137 = vsel %vm133, %v125, 0.0
    %v138 = vsel %vm133, %v130, 0.0
    %v139 = vadd.f32 %v137, %v138
    %v140 = vrot.slane %v139, 4
    %v141 = vadd.f32 %v139, %v140
    %v142 = vrot.slane %v141, 2
    %v143 = vadd.f32 %v141, %v142
    %v144 = vrot.slane %v143, 1
    %v145 = vadd.f32 %v143, %v144
    %v146 = vadd.f32 %v136, %v145
    %vm147 = vcmask 253952
    %148 = vst.msk [vmem:[#allocation4] sm:$0x1] %vm147, %v146
    %v149 = vld [vmem:[#allocation6] sm:$0x1]
    %v150 = vmul.f32 %v125, %v125
    %v151 = vmul.f32 %v130, %v130
    %v152 = vsel %vm133, %v150, 0.0
    %v153 = vsel %vm133, %v151, 0.0
    %v154 = vadd.f32 %v152, %v153
    %v155 = vrot.slane %v154, 4
    %v156 = vadd.f32 %v154, %v155
    %v157 = vrot.slane %v156, 2
    %v158 = vadd.f32 %v156, %v157
    %v159 = vrot.slane %v158, 1
    %v160 = vadd.f32 %v158, %v159
    %v161 = vadd.f32 %v149, %v160
    %162 = vst.msk [vmem:[#allocation6] sm:$0x1] %vm147, %v161
    // Predicated region
    $region14: #{tpu_custom_call.1} parent=1 // pred_check
      _
    $region15: #{tpu_custom_call.1} parent=1 // pred_check_branch
      %164 = sbr.rel (0) target = $region17
    $region16: #{tpu_custom_call.1} parent=1 // pred_region
      %s166 = ssub.s32 256, 256
      %167 = vsyncadd [#allocation3], %s166
      %s168 = sshll.u32 [#allocation2], 4
      %s169 = int_to_ptr.vmem [resolvable:$true] %s168
      %174 = dma.vmem_to_hbm [thread:$0]  %s169, 256, %s2, [#allocation3], 128, 128, 8
    $region17: #{tpu_custom_call.1} parent=1 // pred_fallthru
      _
    // Predicated region
    $region18: #{tpu_custom_call.1} parent=1 // pred_check
      _
    $region19: #{tpu_custom_call.1} parent=1 // pred_check_branch
      %176 = sbr.rel (0) target = $region21
    $region20: #{tpu_custom_call.1} parent=1 // pred_region
      %s178 = ssub.s32 16, 16
      %179 = vsyncadd [#allocation5], %s178
      %s181 = sshll.u32 [#allocation4], 4
      %s182 = int_to_ptr.vmem [resolvable:$true] %s181
      %184 = dma.vmem_to_hbm [thread:$0]  %s182, 16, %s3, [#allocation5]
    $region21: #{tpu_custom_call.1} parent=1 // pred_fallthru
      _
    // Predicated region
    $region22: #{tpu_custom_call.1} parent=1 // pred_check
      _
    $region23: #{tpu_custom_call.1} parent=1 // pred_check_branch
      %186 = sbr.rel (0) target = $region25
    $region24: #{tpu_custom_call.1} parent=1 // pred_region
      %s188 = ssub.s32 16, 16
      %189 = vsyncadd [#allocation5], %s188
      %s191 = sshll.u32 [#allocation6], 4
      %s192 = int_to_ptr.vmem [resolvable:$true] %s191
      %194 = dma.vmem_to_hbm [thread:$0]  %s192, 16, %s4, [#allocation5]
    $region25: #{tpu_custom_call.1} parent=1 // pred_fallthru
      _
    // Predicated region
    $region26: #{tpu_custom_call.1} parent=1 // pred_check
      _
    $region27: #{tpu_custom_call.1} parent=1 // pred_check_branch
      %196 = sbr.rel (0) target = $region29
    $region28: #{tpu_custom_call.1} parent=1 // pred_region
      %197 = dma.done [#allocation3], 256
    $region29: #{tpu_custom_call.1} parent=1 // pred_fallthru
      _
    // Predicated region
    $region30: #{tpu_custom_call.1} parent=1 // pred_check
      _
    $region31: #{tpu_custom_call.1} parent=1 // pred_check_branch
      %199 = sbr.rel (0) target = $region33
    $region32: #{tpu_custom_call.1} parent=1 // pred_region
      %200 = dma.done [#allocation5], 16
    $region33: #{tpu_custom_call.1} parent=1 // pred_fallthru
      _
    // Predicated region
    $region34: #{tpu_custom_call.1} parent=1 // pred_check
      _
    $region35: #{tpu_custom_call.1} parent=1 // pred_check_branch
      %202 = sbr.rel (0) target = $region37
    $region36: #{tpu_custom_call.1} parent=1 // pred_region
      %203 = dma.done [#allocation5], 16
    $region37: #{tpu_custom_call.1} parent=1 // pred_fallthru
      _
    %204 = vsyncpa [#allocation3], 1
    %205 = vsyncpa [#allocation5], 1

</llo_original>
